<compile_context>
chip_gen: v5e
topology: v5e:2x2
jax: 0.10.0
libtpu: 0.0.40
codegen_flags: <defaults>
</compile_context>

<pallas_src>
import functools

import jax
import jax.numpy as jnp
from jax.experimental import pallas as pl
from jax.experimental.pallas import tpu as pltpu


def _choose_tiles(n: int, c_out: int, itemsize: int,
                  tile_budget_bytes: int = 2 * 1024 * 1024):
    """Pick (ti, tj) tiles over the (N, N) pairwise grid.

    Output blocks are (1, ti, tj*c_out) over a flattened (B, N, N*c_out) output:
      * ti | N and (ti % 8 == 0 or ti == N)             (sublane block-dim rule)
      * tj | N and ((tj*c_out) % 128 == 0 or tj == N)   (lane-dense last dim)
    Preferences:
      * tj small (the wrapper-side left template costs ~tj/N of the output bytes)
        but wide enough for >= ~1 KiB contiguous HBM write chunks,
      * ti as large as keeps the output tile <= ~2 MiB: amortizes per-step
        overhead while staying well inside scoped VMEM (16 MiB v5e / 32 MiB
        v6e-v7x defaults) with double buffering -> no vmem_limit override needed.
    """
    divisors = [d for d in range(1, n + 1) if n % d == 0]

    lane_ok = [d for d in divisors if (d * c_out) % 128 == 0 or d == n]
    fitting = [d for d in lane_ok if 8 * d * c_out * itemsize <= tile_budget_bytes]
    if not fitting:
        fitting = [lane_ok[0]]
    tj = next((d for d in fitting if d * c_out * itemsize >= 1024), fitting[-1])

    ti_cands = [d for d in divisors if d % 8 == 0 or d == n]
    ti_fit = [d for d in ti_cands if d * tj * c_out * itemsize <= tile_budget_bytes]
    ti = ti_fit[-1] if ti_fit else ti_cands[0]
    return ti, tj


def _elementwise_kernel(l_ref, r_ref, o_ref, *, join: str):
    # l_ref: (1, TI, W) left template tile (row i varies)
    # r_ref: (1, 1,  W) right template row (col j varies)
    # o_ref: (1, TI, W) lane-dense output tile
    l = l_ref[0]                                    # (TI, W)
    r = jnp.broadcast_to(r_ref[0], l.shape)         # sublane broadcast (cheap)
    if join == "add":
        o_ref[0] = l + r
    else:  # 'mul'
        o_ref[0] = l * r


def _cat_kernel(l_ref, r_ref, m_ref, o_ref):
    # Zero-interleaved templates + precomputed lane mask: within each C_out-wide
    # group, lanes [0, C) come from x_l (left template), lanes [C, 2C) from x_r.
    l = l_ref[0]                                    # (TI, W)
    r = jnp.broadcast_to(r_ref[0], l.shape)         # (1, W) -> (TI, W)
    take_left = jnp.broadcast_to(m_ref[...] != 0, l.shape)
    o_ref[0] = jnp.where(take_left, l, r)


def transform2d(x_l: jax.Array, x_r: jax.Array, join: str = "cat") -> jax.Array:
    assert x_l.shape == x_r.shape
    assert x_l.dtype == x_r.dtype
    if join not in ("cat", "add", "mul"):
        raise ValueError(f"unknown join: {join}")

    B, N, C = x_l.shape
    C_out = 2 * C if join == "cat" else C
    itemsize = jnp.dtype(x_l.dtype).itemsize
    ti, tj = _choose_tiles(N, C_out, itemsize)
    assert N % ti == 0 and N % tj == 0
    w = tj * C_out  # lane-dense block width (multiple of 128 or == N*C_out)

    # ---- lane-dense operand templates (small wrapper-side XLA ops) ----------
    if join == "cat":
        pad = jnp.zeros_like(x_l)
        l_src = jnp.concatenate([x_l, pad], axis=-1)   # row i: [x_l[i] | 0]
        r_src = jnp.concatenate([pad, x_r], axis=-1)   # row j: [0 | x_r[j]]
    else:
        l_src, r_src = x_l, x_r
    l_t = jnp.tile(l_src, (1, 1, tj))                  # (B, N, w)
    r_t = r_src.reshape(B, 1, N * C_out)               # (B, 1, N*C_out)

    # ---- specs --------------------------------------------------------------
    # Left template depends on (b, i) only -> DMA'd once per i-row (Pallas elides
    # copies for unchanged block indices); right row is a tiny per-j-step DMA.
    l_spec = pl.BlockSpec((1, ti, w), lambda b, i, j: (b, i, 0))
    r_spec = pl.BlockSpec((1, 1, w), lambda b, i, j: (b, 0, j))
    o_spec = pl.BlockSpec((1, ti, w), lambda b, i, j: (b, i, j))

    if join == "cat":
        mask = (jnp.arange(w, dtype=jnp.int32) % C_out) < C
        mask = mask.astype(jnp.int32).reshape(1, w)    # resident, DMA'd once
        kernel = _cat_kernel
        in_specs = [l_spec, r_spec, pl.BlockSpec((1, w), lambda b, i, j: (0, 0))]
        args = (l_t, r_t, mask)
    else:
        kernel = functools.partial(_elementwise_kernel, join=join)
        in_specs = [l_spec, r_spec]
        args = (l_t, r_t)

    out_flat = pl.pallas_call(
        kernel,
        out_shape=jax.ShapeDtypeStruct((B, N, N * C_out), x_l.dtype),
        grid_spec=pltpu.PrefetchScalarGridSpec(
            num_scalar_prefetch=0,
            grid=(B, N // ti, N // tj),
            in_specs=in_specs,
            out_specs=o_spec,
        ),
        compiler_params=pltpu.CompilerParams(
            dimension_semantics=("parallel", "parallel", "parallel"),
        ),
    )(*args)

    # Free, metadata-only reshape back to the PyTorch output layout.
    return out_flat.reshape(B, N, N, C_out)


def _reference(x_l, x_r, join="cat"):
    B, N, C = x_l.shape
    left = jnp.broadcast_to(x_l[:, :, None, :], (B, N, N, C))
    right = jnp.broadcast_to(x_r[:, None, :, :], (B, N, N, C))
    if join == "cat":
        return jnp.concatenate([left, right], axis=-1)
    elif join == "add":
        return left + right
    elif join == "mul":
        return left * right
    raise ValueError(join)


if __name__ == "__main__":
    key = jax.random.PRNGKey(0)
    ok = True
    # (2, 8, 32) exercises the narrow-channel lane-dense path (C_out < 128);
    # (2, 16, 128) exercises wide channels and multiple j-blocks per row.
    for (B, N, C) in [(2, 8, 32), (2, 16, 128)]:
        k_l, k_r = jax.random.split(jax.random.fold_in(key, N))
        x_l = jax.random.normal(k_l, (B, N, C), dtype=jnp.float32)
        x_r = jax.random.normal(k_r, (B, N, C), dtype=jnp.float32)
        for join in ("cat", "add", "mul"):
            out = transform2d(x_l, x_r, join=join)
            jax.block_until_ready(out)
            ref = _reference(x_l, x_r, join=join)
            if out.shape != ref.shape or not bool(jnp.allclose(out, ref, atol=1e-6)):
                ok = False
                print(f"MISMATCH for B={B} N={N} C={C} join={join}")
    if ok:
        print("KERNEL_OK")
</pallas_src>

<mosaic_0001>
module attributes {stable_mosaic.version = 11 : i64} {
  func.func @_cat_kernel(%arg0: i32, %arg1: i32, %arg2: i32, %arg3: memref<1x8x256xf32, #tpu.memory_space<vmem>>, %arg4: memref<1x1x256xf32, #tpu.memory_space<vmem>>, %arg5: memref<1x256xi32, #tpu.memory_space<vmem>>, %arg6: memref<1x8x256xf32, #tpu.memory_space<vmem>>) attributes {dimension_semantics = [#tpu.dimension_semantics<parallel>, #tpu.dimension_semantics<parallel>, #tpu.dimension_semantics<parallel>], iteration_bounds = array<i64: 2, 1, 2>, scalar_prefetch = 0 : i64, scratch_operands = 0 : i64, tpu.core_type = #tpu.core_type<tc>, window_params = [{transform_indices = @transform_0, window_bounds = array<i64: 1, 8, 256>}, {transform_indices = @transform_1, window_bounds = array<i64: 1, 1, 256>}, {pipeline_mode = #tpu.pipeline_mode<synchronous>, transform_indices = @transform_2, window_bounds = array<i64: 1, 256>}, {transform_indices = @transform_3, window_bounds = array<i64: 1, 8, 256>}]} {
    %c0 = arith.constant 0 : index
    %c0_0 = arith.constant 0 : index
    %c0_1 = arith.constant 0 : index
    %0 = vector.load %arg3[%c0, %c0_0, %c0_1] : memref<1x8x256xf32, #tpu.memory_space<vmem>>, vector<1x8x256xf32>
    %1 = vector.shape_cast %0 : vector<1x8x256xf32> to vector<8x256xf32>
    %c0_2 = arith.constant 0 : index
    %c0_3 = arith.constant 0 : index
    %c0_4 = arith.constant 0 : index
    %2 = vector.load %arg4[%c0_2, %c0_3, %c0_4] : memref<1x1x256xf32, #tpu.memory_space<vmem>>, vector<1x1x256xf32>
    %3 = vector.shape_cast %2 : vector<1x1x256xf32> to vector<1x256xf32>
    %4 = vector.shape_cast %3 : vector<1x256xf32> to vector<1x256xf32>
    %5 = vector.broadcast %4 : vector<1x256xf32> to vector<8x256xf32>
    %c0_5 = arith.constant 0 : index
    %c0_6 = arith.constant 0 : index
    %6 = vector.load %arg5[%c0_5, %c0_6] : memref<1x256xi32, #tpu.memory_space<vmem>>, vector<1x256xi32>
    %c0_i32 = arith.constant 0 : i32
    %7 = vector.broadcast %c0_i32 : i32 to vector<1x256xi32>
    %8 = arith.cmpi ne, %6, %7 : vector<1x256xi32>
    %9 = vector.shape_cast %8 : vector<1x256xi1> to vector<1x256xi1>
    %10 = vector.broadcast %9 : vector<1x256xi1> to vector<8x256xi1>
    %11 = arith.select %10, %1, %5 : vector<8x256xi1>, vector<8x256xf32>
    %c0_7 = arith.constant 0 : index
    %c0_8 = arith.constant 0 : index
    %c0_9 = arith.constant 0 : index
    %12 = vector.load %arg6[%c0_7, %c0_8, %c0_9] : memref<1x8x256xf32, #tpu.memory_space<vmem>>, vector<1x8x256xf32>
    %13 = vector.shape_cast %12 : vector<1x8x256xf32> to vector<8x256xf32>
    %14 = vector.shape_cast %11 : vector<8x256xf32> to vector<1x8x256xf32>
    tpu.vector_store %arg6[%c0_7, %c0_8, %c0_9], %14 {strides = array<i32>} : memref<1x8x256xf32, #tpu.memory_space<vmem>>, vector<1x8x256xf32>,
    return
  }
  func.func @transform_0(%arg0: i32, %arg1: i32, %arg2: i32) -> (i32, i32, i32) {
    %c0_i32 = arith.constant 0 : i32
    %c0_i32_0 = arith.constant 0 : i32
    return %arg0, %arg1, %c0_i32 : i32, i32, i32
  }
  func.func @transform_1(%arg0: i32, %arg1: i32, %arg2: i32) -> (i32, i32, i32) {
    %c0_i32 = arith.constant 0 : i32
    %c0_i32_0 = arith.constant 0 : i32
    return %arg0, %c0_i32, %arg2 : i32, i32, i32
  }
  func.func @transform_2(%arg0: i32, %arg1: i32, %arg2: i32) -> (i32, i32) {
    %c0_i32 = arith.constant 0 : i32
    %c0_i32_0 = arith.constant 0 : i32
    %c0_i32_1 = arith.constant 0 : i32
    return %c0_i32, %c0_i32_0 : i32, i32
  }
  func.func @transform_3(%arg0: i32, %arg1: i32, %arg2: i32) -> (i32, i32, i32) {
    %c0_i32 = arith.constant 0 : i32
    return %arg0, %arg1, %arg2 : i32, i32, i32
  }
}

</mosaic_0001>

<llo_original>
// kernel: tpu_custom_call.1
$region0: #{tpu_custom_call.1}
  #allocation0 [shape = 'u32[]', space=smem, size = 0x4, offset = 0x4, fixed_abs, tag = 'smem constant byte address 0x4 - core index']
  #allocation1 [shape = 'u32[72,128]{1,0:T(1,128)}', space=vmem, size = 0x9000, scoped, tag = 'internal scratch']
  %s0 = inlined_call_operand.hbm [shape: f32[2,8,256], index: 0, kind: input, shape index: {}]
  %s1 = inlined_call_operand.hbm [shape: f32[2,1,512], index: 1, kind: input, shape index: {}]
  %s2 = inlined_call_operand.hbm [shape: s32[1,256], index: 2, kind: input, shape index: {}]
  %s3 = inlined_call_operand.hbm [shape: f32[2,8,512], index: 3, kind: output, shape index: {}]
  %s4 = sld [smem:[#allocation0]]
  $region57: #{tpu_custom_call.1} parent=0
    _
  %s6 = ssub.s32 1, %s4
  %s7 = scalar_select 0, %s6, %s4
  $region1: #{tpu_custom_call.1} parent=0
    #allocation2 [shape = 'u8[16384]{0}', space=vmem, size = 0x4000, scoped, tag = 'input window, operand 0']
    #allocation3 [shape = 's32[2]{0}', space=sflag, size = 0x8, scoped, tag = 'scoped memory for tpu_custom_call.1']
    #allocation4 [shape = 's32[2]{0}', space=sflag, size = 0x8, scoped, tag = 'scoped memory for tpu_custom_call.1']
    #allocation5 [shape = 'u8[2048]{0}', space=vmem, size = 0x800, scoped, tag = 'input window, operand 1']
    #allocation6 [shape = 's32[2]{0}', space=sflag, size = 0x8, scoped, tag = 'scoped memory for tpu_custom_call.1']
    #allocation7 [shape = 'u8[1024]{0}', space=vmem, size = 0x400, scoped, tag = 'input window, operand 2, single buffered']
    #allocation8 [shape = 'u8[16384]{0}', space=vmem, size = 0x4000, scoped, tag = 'output window, operand 0']
    %8 = vsyncpa [#allocation3], 0
    %s9 = scalar_lea.sflag [#allocation3], 1
    %10 = vsyncpa %s9, 0
    %11 = vsyncpa [#allocation6], 0
    %s12 = scalar_lea.sflag [#allocation6], 1
    %13 = vsyncpa %s12, 0
    %14 = vsyncpa [#allocation4], 0
    %s15 = scalar_lea.sflag [#allocation4], 1
    %16 = vsyncpa %s15, 0
    loop: start=0, step=1, limit=6
    $region2: #{tpu_custom_call.1} parent=1 // loop_pre_header
      _
    $region3: #{tpu_custom_call.1} parent=1 // loop_header
      %s18 = sphi 0, %s22
      %p19 = scmp.ge.s32.totalorder %s18, 6
      %s25 = sphi 0, %s44
      %s26 = sphi 0, %s40
      %s27 = sphi 0, %s36
      %s28 = sphi 0, %s25
      %s29 = sphi 0, %s26
      %s30 = sphi 0, %s27
      %s31 = sphi 0, %s28
      %s32 = sphi 0, %s29
      %s33 = sphi 0, %s30
      %s49 = sphi 0, %s51
      %s52 = sphi 0, %s49
      %s53 = sphi 0, %s52
      %s69 = sphi 0, %s53
      %s77 = sphi 0, %s79
      %s80 = sphi 0, %s77
      %s81 = sphi 0, %s80
      %s97 = sphi 0, %s81
      %s101 = sphi 0, %s101
      %s103 = sphi 0, %s101
      %s104 = sphi 0, %s103
      %s118 = sphi 0, %s104
      %s128 = sphi 0, %s130
      %s131 = sphi 0, %s128
      %s132 = sphi 0, %s131
      %s148 = sphi 0, %s132
    $region4: #{tpu_custom_call.1} parent=1 // loop_header_branch
      %21 = sbr.rel (%p19) target = $region8
    $region5: #{tpu_custom_call.1} parent=1 // loop_body
      %s23 = ssub.s32 %s18, 1
      %s24 = ssub.s32 %s18, 2
      %s34 = sadd.s32 1, %s27
      %p35 = scmp.ge.s32.totalorder %s34, 2
      %s36 = scalar_select %p35, 0, %s34
      %s37 = sadd.s32 1, %s26
      %s38 = scalar_select %p35, %s37, %s26
      %p39 = scmp.ge.s32.totalorder %s38, 1
      %s40 = scalar_select %p39, 0, %s38
      %s41 = sadd.s32 1, %s25
      %s42 = scalar_select %p39, %s41, %s25
      %p43 = scmp.ge.s32.totalorder %s42, 2
      %s44 = scalar_select %p43, 0, %s42
      %s45 = ssub.s32 %s25, %s44
      %s46 = ssub.s32 %s26, %s40
      %s47 = sor.u32 %s45, %s46
      %p48 = scmp.eq.s32.totalorder %s47, 0
      %s50 = sadd.s32 %s49, 1
      %s51 = scalar_select %p48, %s49, %s50
      %p54 = pneg %p48
      %p55 = scmp.eq.s32.totalorder %s18, 3
      %p56 = por %p54, %p55
      %p57 = scmp.ne.s32.totalorder %s49, %s52
      %p58 = scmp.eq.s32.totalorder %s18, 0
      %p59 = por %p57, %p58
      %p60 = scmp.ne.s32.totalorder %s49, %s52
      %p61 = scmp.eq.s32.totalorder %s23, 3
      %p62 = por %p60, %p61
      %p63 = scmp.ne.s32.totalorder %s52, %s53
      %p64 = scmp.eq.s32.totalorder %s23, 0
      %p65 = por %p63, %p64
      %p66 = scmp.ne.s32.totalorder %s52, %s53
      %p67 = scmp.eq.s32.totalorder %s24, 3
      %p68 = por %p66, %p67
      %p70 = scmp.ne.s32.totalorder %s53, %s69
      %p71 = scmp.eq.s32.totalorder %s24, 0
      %p72 = por %p70, %p71
      %s73 = ssub.s32 %s25, %s44
      %s74 = ssub.s32 %s27, %s36
      %s75 = sor.u32 %s73, %s74
      %p76 = scmp.eq.s32.totalorder %s75, 0
      %s78 = sadd.s32 %s77, 1
      %s79 = scalar_select %p76, %s77, %s78
      %p82 = pneg %p76
      %p83 = scmp.eq.s32.totalorder %s18, 3
      %p84 = por %p82, %p83
      %p85 = scmp.ne.s32.totalorder %s77, %s80
      %p86 = scmp.eq.s32.totalorder %s18, 0
      %p87 = por %p85, %p86
      %p88 = scmp.ne.s32.totalorder %s77, %s80
      %p89 = scmp.eq.s32.totalorder %s23, 3
      %p90 = por %p88, %p89
      %p91 = scmp.ne.s32.totalorder %s80, %s81
      %p92 = scmp.eq.s32.totalorder %s23, 0
      %p93 = por %p91, %p92
      %p94 = scmp.ne.s32.totalorder %s80, %s81
      %p95 = scmp.eq.s32.totalorder %s24, 3
      %p96 = por %p94, %p95
      %p98 = scmp.ne.s32.totalorder %s81, %s97
      %p99 = scmp.eq.s32.totalorder %s24, 0
      %p100 = por %p98, %p99
      %s102 = sadd.s32 %s101, 1
      %p105 = scmp.eq.s32.totalorder %s18, 3
      %p106 = scmp.ne.s32.totalorder %s101, %s103
      %p107 = scmp.eq.s32.totalorder %s18, 0
      %p108 = por %p106, %p107
      %p109 = scmp.ne.s32.totalorder %s101, %s103
      %p110 = scmp.eq.s32.totalorder %s23, 3
      %p111 = por %p109, %p110
      %p112 = scmp.ne.s32.totalorder %s103, %s104
      %p113 = scmp.eq.s32.totalorder %s23, 0
      %p114 = por %p112, %p113
      %p115 = scmp.ne.s32.totalorder %s103, %s104
      %p116 = scmp.eq.s32.totalorder %s24, 3
      %p117 = por %p115, %p116
      %p119 = scmp.ne.s32.totalorder %s104, %s118
      %p120 = scmp.eq.s32.totalorder %s24, 0
      %p121 = por %p119, %p120
      %s122 = ssub.s32 %s25, %s44
      %s123 = ssub.s32 %s26, %s40
      %s124 = sor.u32 %s122, %s123
      %s125 = ssub.s32 %s27, %s36
      %s126 = sor.u32 %s124, %s125
      %p127 = scmp.eq.s32.totalorder %s126, 0
      %s129 = sadd.s32 %s128, 1
      %s130 = scalar_select %p127, %s128, %s129
      %p133 = pneg %p127
      %p134 = scmp.eq.s32.totalorder %s18, 3
      %p135 = por %p133, %p134
      %p136 = scmp.ne.s32.totalorder %s128, %s131
      %p137 = scmp.eq.s32.totalorder %s18, 0
      %p138 = por %p136, %p137
      %p139 = scmp.ne.s32.totalorder %s128, %s131
      %p140 = scmp.eq.s32.totalorder %s23, 3
      %p141 = por %p139, %p140
      %p142 = scmp.ne.s32.totalorder %s131, %s132
      %p143 = scmp.eq.s32.totalorder %s23, 0
      %p144 = por %p142, %p143
      %p145 = scmp.ne.s32.totalorder %s131, %s132
      %p146 = scmp.eq.s32.totalorder %s24, 3
      %p147 = por %p145, %p146
      %p149 = scmp.ne.s32.totalorder %s132, %s148
      %p150 = scmp.eq.s32.totalorder %s24, 0
      %p151 = por %p149, %p150
      %p152 = scmp.le.s32.totalorder 1, %s18
      %p153 = scmp.lt.s32.totalorder %s18, 5
      %p154 = pnand %p152, %p153
      %p155 = pneg %p154
      // Predicated region
      $region9: #{tpu_custom_call.1} parent=5 // pred_check
        _
      $region10: #{tpu_custom_call.1} parent=5 // pred_check_branch
        %157 = sbr.rel (%p154) target = $region12
      $region11: #{tpu_custom_call.1} parent=5 // pred_region
        %s158 = ssub.s32 %s18, 1
        // Predicated region
        $region13: #{tpu_custom_call.1} parent=11 // pred_check
          %p159 = pneg %p114
        $region14: #{tpu_custom_call.1} parent=11 // pred_check_branch
          %161 = sbr.rel (%p159) target = $region16
        $region15: #{tpu_custom_call.1} parent=11 // pred_region
          %163 = vsyncadd [#allocation6], 0
          %s165 = sshll.u32 %s2, 4
          %s166 = int_to_ptr.hbm [resolvable:$true] %s165
          %s167 = sshll.u32 [#allocation7], 4
          %s168 = int_to_ptr.vmem [resolvable:$true] %s167
          %170 = dma.hbm_to_vmem [thread:$0]  %s166, 32, %s168, [#allocation6]
        $region16: #{tpu_custom_call.1} parent=11 // pred_fallthru
          _
      $region12: #{tpu_custom_call.1} parent=5 // pred_fallthru
        _
      %p171 = scmp.lt.s32.totalorder %s18, 4
      // Predicated region
      $region17: #{tpu_custom_call.1} parent=5 // pred_check
        %p172 = pneg %p171
      $region18: #{tpu_custom_call.1} parent=5 // pred_check_branch
        %174 = sbr.rel (%p172) target = $region20
      $region19: #{tpu_custom_call.1} parent=5 // pred_region
        // Predicated region
        $region21: #{tpu_custom_call.1} parent=19 // pred_check
          %p175 = pneg %p59
        $region22: #{tpu_custom_call.1} parent=19 // pred_check_branch
          %177 = sbr.rel (%p175) target = $region24
        $region23: #{tpu_custom_call.1} parent=19 // pred_region
          %s178 = sand.u32 %s49, 1
          %s179 = scalar_lea.sflag [#allocation3], %s178
          %s180 = sand.u32 %s49, 1
          %s181 = smul.addr %s180, 16
          %s182 = scalar_lea.vmem [#allocation2], %s181
          %184 = vsyncadd %s179, 0
          %s185 = smul.addr %s26, 2
          %s186 = smul.addr %s25, 2
          %s187 = sadd.s32 %s185, %s186
          %s188 = smul.addr %s187, 8
          %s189 = scalar_lea.hbm %s0, %s188
          %s191 = sshll.u32 %s189, 4
          %s192 = int_to_ptr.hbm [resolvable:$true] %s191
          %s193 = sshll.u32 %s182, 4
          %s194 = int_to_ptr.vmem [resolvable:$true] %s193
          %196 = dma.hbm_to_vmem [thread:$0]  %s192, 256, %s194, %s179
        $region24: #{tpu_custom_call.1} parent=19 // pred_fallthru
          _
        // Predicated region
        $region25: #{tpu_custom_call.1} parent=19 // pred_check
          %p197 = pneg %p87
        $region26: #{tpu_custom_call.1} parent=19 // pred_check_branch
          %199 = sbr.rel (%p197) target = $region28
        $region27: #{tpu_custom_call.1} parent=19 // pred_region
          %s200 = sand.u32 %s18, 1
          %s201 = scalar_lea.sflag [#allocation6], %s200
          %s202 = sand.u32 %s77, 1
          %s203 = smul.addr %s202, 2
          %s204 = scalar_lea.vmem [#allocation5], %s203
          %s205 = smul.u32 2, %s27
          %207 = vsyncadd %s201, 0
          %s208 = smul.addr %s25, 4
          %s209 = sadd.s32 %s205, %s208
          %s210 = scalar_lea.hbm %s1, %s209
          %s212 = sshll.u32 %s210, 4
          %s213 = int_to_ptr.hbm [resolvable:$true] %s212
          %s214 = sshll.u32 %s204, 4
          %s215 = int_to_ptr.vmem [resolvable:$true] %s214
          %217 = dma.hbm_to_vmem [thread:$0]  %s213, 32, %s215, %s201
        $region28: #{tpu_custom_call.1} parent=19 // pred_fallthru
          _
      $region20: #{tpu_custom_call.1} parent=5 // pred_fallthru
        _
      %p218 = scmp.le.s32.totalorder 1, %s18
      %p219 = scmp.lt.s32.totalorder %s18, 5
      %p220 = pnand %p218, %p219
      %p221 = pneg %p220
      // Predicated region
      $region29: #{tpu_custom_call.1} parent=5 // pred_check
        _
      $region30: #{tpu_custom_call.1} parent=5 // pred_check_branch
        %223 = sbr.rel (%p220) target = $region32
      $region31: #{tpu_custom_call.1} parent=5 // pred_region
        %s224 = ssub.s32 %s18, 1
        %s225 = sand.u32 %s52, 1
        %s226 = scalar_lea.sflag [#allocation3], %s225
        %s227 = sand.u32 %s52, 1
        %s228 = smul.addr %s227, 16
        %s229 = scalar_lea.vmem [#allocation2], %s228
        // Predicated region
        $region33: #{tpu_custom_call.1} parent=31 // pred_check
          %p230 = pneg %p65
        $region34: #{tpu_custom_call.1} parent=31 // pred_check_branch
          %232 = sbr.rel (%p230) target = $region36
        $region35: #{tpu_custom_call.1} parent=31 // pred_region
          %234 = dma.done %s226, 256
        $region36: #{tpu_custom_call.1} parent=31 // pred_fallthru
          _
        %s235 = sand.u32 %s23, 1
        %s236 = scalar_lea.sflag [#allocation6], %s235
        %s237 = sand.u32 %s80, 1
        %s238 = smul.addr %s237, 2
        %s239 = scalar_lea.vmem [#allocation5], %s238
        // Predicated region
        $region37: #{tpu_custom_call.1} parent=31 // pred_check
          %p240 = pneg %p93
        $region38: #{tpu_custom_call.1} parent=31 // pred_check_branch
          %242 = sbr.rel (%p240) target = $region40
        $region39: #{tpu_custom_call.1} parent=31 // pred_region
          %244 = dma.done %s236, 32
        $region40: #{tpu_custom_call.1} parent=31 // pred_fallthru
          _
        // Predicated region
        $region41: #{tpu_custom_call.1} parent=31 // pred_check
          %p245 = pneg %p114
        $region42: #{tpu_custom_call.1} parent=31 // pred_check_branch
          %247 = sbr.rel (%p245) target = $region44
        $region43: #{tpu_custom_call.1} parent=31 // pred_region
          %249 = dma.done [#allocation6], 32
        $region44: #{tpu_custom_call.1} parent=31 // pred_fallthru
          _
        %s250 = sand.u32 %s52, 1
        %s251 = scalar_lea.sflag [#allocation3], %s250
        %s252 = sand.u32 %s52, 1
        %s253 = smul.addr %s252, 16
        %s254 = scalar_lea.vmem [#allocation2], %s253
        %p255 = pneg %p65
        %p256 = pneg %p62
        %s257 = sand.u32 %s23, 1
        %s258 = scalar_lea.sflag [#allocation6], %s257
        %s259 = sand.u32 %s80, 1
        %s260 = smul.addr %s259, 2
        %s261 = scalar_lea.vmem [#allocation5], %s260
        %p262 = pneg %p93
        %p263 = pneg %p90
        %p264 = pneg %p114
        %p265 = pneg %p111
        %p266 = pneg %p144
        %p267 = pneg %p141
        %s268 = sand.u32 %s131, 1
        %s269 = scalar_lea.sflag [#allocation4], %s268
        %s270 = sand.u32 %s131, 1
        %s271 = smul.addr %s270, 16
        %s272 = scalar_lea.vmem [#allocation8], %s271
        %s273 = smul.u32 2, %s30
        %s274 = smul.u32 2, %s30
        %v275 = vld [vmem:[%s229] sm:$0xff]
        %v276 = vld [vmem:[%s229 + $0x8] sm:$0xff]
        %v277 = vld [vmem:[%s239] sm:$0x3]
        %v279 = vperm.slane %v277, 0
        %v280 = vperm.slane %v277, 1
        %v283 = vld [vmem:[#allocation7] sm:$0x3]
        %vm284 = vcmp.ne.s32.totalorder %v283, 0
        %v285 = vsel %vm284, 1, 0
        %v286 = vperm.slane %v285, 0
        %v287 = vperm.slane %v285, 1
        %vm288 = vcmp.eq.s32.totalorder %v286, 1
        %vm289 = vcmp.eq.s32.totalorder %v287, 1
        %v290 = vsel %vm288, %v275, %v279
        %v291 = vsel %vm289, %v276, %v280
        %292 = vst [vmem:[%s272] sm:$0xff] %v290
        %293 = vst [vmem:[%s272 + $0x8] sm:$0xff] %v291
        %s294 = sand.u32 %s131, 1
        %s295 = scalar_lea.sflag [#allocation4], %s294
        %s296 = sand.u32 %s131, 1
        %s297 = smul.addr %s296, 16
        %s298 = scalar_lea.vmem [#allocation8], %s297
        // Predicated region
        $region45: #{tpu_custom_call.1} parent=31 // pred_check
          %p299 = pneg %p141
        $region46: #{tpu_custom_call.1} parent=31 // pred_check_branch
          %301 = sbr.rel (%p299) target = $region48
        $region47: #{tpu_custom_call.1} parent=31 // pred_region
          %s302 = smul.u32 2, %s30
          %304 = vsyncadd %s295, 0
          %s305 = smul.addr %s29, 4
          %s306 = sadd.s32 %s302, %s305
          %s307 = smul.addr %s28, 4
          %s308 = sadd.s32 %s306, %s307
          %s309 = smul.addr %s308, 8
          %s310 = scalar_lea.hbm %s3, %s309
          %s312 = sshll.u32 %s298, 4
          %s313 = int_to_ptr.vmem [resolvable:$true] %s312
          %s314 = sshll.u32 %s310, 4
          %s315 = int_to_ptr.hbm [resolvable:$true] %s314
          %317 = dma.vmem_to_hbm [thread:$0]  %s313, 256, %s315, %s295
        $region48: #{tpu_custom_call.1} parent=31 // pred_fallthru
          _
      $region32: #{tpu_custom_call.1} parent=5 // pred_fallthru
        _
      %p318 = scmp.le.s32.totalorder 2, %s18
      // Predicated region
      $region49: #{tpu_custom_call.1} parent=5 // pred_check
        %p319 = pneg %p318
      $region50: #{tpu_custom_call.1} parent=5 // pred_check_branch
        %321 = sbr.rel (%p319) target = $region52
      $region51: #{tpu_custom_call.1} parent=5 // pred_region
        %s322 = ssub.s32 %s18, 2
        // Predicated region
        $region53: #{tpu_custom_call.1} parent=51 // pred_check
          %p323 = pneg %p147
        $region54: #{tpu_custom_call.1} parent=51 // pred_check_branch
          %325 = sbr.rel (%p323) target = $region56
        $region55: #{tpu_custom_call.1} parent=51 // pred_region
          %s326 = sand.u32 %s132, 1
          %s327 = scalar_lea.sflag [#allocation4], %s326
          %s328 = sand.u32 %s132, 1
          %s329 = smul.addr %s328, 16
          %s330 = scalar_lea.vmem [#allocation8], %s329
          %332 = dma.done %s327, 256
        $region56: #{tpu_custom_call.1} parent=51 // pred_fallthru
          _
      $region52: #{tpu_custom_call.1} parent=5 // pred_fallthru
        _
    $region6: #{tpu_custom_call.1} parent=1 // loop_footer
      %s22 = sadd.s32 1, %s18
    $region7: #{tpu_custom_call.1} parent=1 // loop_footer_branch
      %17 = sbr.rel target = $region3
    $region8: #{tpu_custom_call.1} parent=1 // loop_exit
      _
    %333 = vsyncpa [#allocation3], 1
    %s334 = scalar_lea.sflag [#allocation3], 1
    %335 = vsyncpa %s334, 1
    %336 = vsyncpa [#allocation6], 1
    %s337 = scalar_lea.sflag [#allocation6], 1
    %338 = vsyncpa %s337, 1
    %339 = vsyncpa [#allocation4], 1
    %s340 = scalar_lea.sflag [#allocation4], 1
    %341 = vsyncpa %s340, 1

</llo_original>
